<compile_context>
chip_gen: v6e
topology: v6e:2x2x1
jax: 0.10.0
libtpu: 0.0.40
codegen_flags: <defaults>
</compile_context>

<pallas_src>
import functools

import jax
import jax.numpy as jnp
from jax.experimental import pallas as pl
from jax.experimental.pallas import tpu as pltpu


# ----------------------------------------------------------------------------
# Helpers
# ----------------------------------------------------------------------------
def _vmem_limit_bytes(est_bytes):
    """Raise the scoped-VMEM limit only when big tiles actually need it
    (v5e default is 16 MiB); stay under the current chip's physical VMEM."""
    if est_bytes <= 12 * 1024 * 1024:
        return None
    try:
        cap = pltpu.get_tpu_info().vmem_capacity_bytes
    except Exception:          # conservative fallback = v7x physical VMEM
        cap = 64 * 1024 * 1024
    return int(min(est_bytes + (4 << 20), cap - (4 << 20)))


def _choose_anchor_tile(a_pad, target):
    """Largest multiple of 128 dividing a_pad that is <= target."""
    n = a_pad // 128
    t = max(1, target // 128)
    best = 1
    for m in range(1, n + 1):
        if n % m == 0 and m <= t:
            best = m
    return best * 128


# ----------------------------------------------------------------------------
# Kernel 1: preprocess in native (B, A, F) layout, packed output (B, A, 6+nm):
#   [x1, y1, x2, y2, max_score, category, mask_coef...]
# ----------------------------------------------------------------------------
def _preprocess_kernel(pred_ref, out_ref, *, nc, nm):
    x = pred_ref[0]                                    # (TA, F) f32
    cxy = x[:, 0:2]                                    # centre x, y
    wh = x[:, 2:4]                                     # width, height
    conf = x[:, 4:5]
    scores = x[:, 5:5 + nc] * conf                     # (TA, nc)  scores *= conf

    half = 0.5 * wh                                    # convert_matrix baked in
    x1y1 = cxy - half
    x2y2 = cxy + half

    max_score = jnp.max(scores, axis=1, keepdims=True)               # (TA, 1)
    cls_ids = jax.lax.broadcasted_iota(jnp.int32, scores.shape, 1)
    cls_ids = cls_ids.astype(jnp.float32)
    cat = jnp.min(jnp.where(scores == max_score, cls_ids, float(nc)),
                  axis=1, keepdims=True)               # first-index argmax (float)

    coeffs = x[:, 5 + nc:5 + nc + nm]                  # (TA, nm) mask coefficients
    # One full-tile store (single vst burst) instead of 5 partial lane writes.
    out_ref[0] = jnp.concatenate([x1y1, x2y2, max_score, cat, coeffs], axis=1)


def preprocess(pred, nc, nm):
    """pred: (B, A_pad, F) f32, anchor axis already a multiple of 128."""
    B, A_pad, F = pred.shape
    K = 6 + nm
    # Big tiles, but >= 2 tiles per batch where possible (v7x megacore sharding).
    TA = _choose_anchor_tile(A_pad, max(128, min(8192, A_pad // 2)))
    est = 4 * (TA * F + TA * K) * 4                    # in+out, double-buffered
    kernel = functools.partial(_preprocess_kernel, nc=nc, nm=nm)
    return pl.pallas_call(
        kernel,
        grid=(B, A_pad // TA),
        in_specs=[pl.BlockSpec((1, TA, F), lambda b, a: (b, a, 0))],
        out_specs=pl.BlockSpec((1, TA, K), lambda b, a: (b, a, 0)),
        out_shape=jax.ShapeDtypeStruct((B, A_pad, K), pred.dtype),
        compiler_params=pltpu.CompilerParams(
            dimension_semantics=("parallel", "parallel"),
            vmem_limit_bytes=_vmem_limit_bytes(est)),
    )(pred)


# ----------------------------------------------------------------------------
# Kernel 2: fused RoiAlign ('avg', half_pixel) + mask matmul + sigmoid.
#
# Per detection block j (TD detections):
#   combined = coef_exp_block (TD, B*nm) @ proto_flat (B*nm, H*W)     [MXU, bf16]
#   per detection d: masks[d] = sigmoid( Wy_d @ combined_d @ WxT_d )  [bilinear]
# proto_flat uses a constant block index -> DMA'd from HBM once for the whole
# kernel and kept resident in VMEM across all grid steps.
# ----------------------------------------------------------------------------
def _roi_mask_kernel(rois_ref, coef_ref, proto_ref, out_ref, *,
                     td, res, spatial_scale, H, W):
    j = pl.program_id(0)
    fH, fW, fres = float(H), float(W), float(res)

    # 1) Channel contraction for the whole block: one MXU matmul (bf16 in, f32 acc).
    combined = jnp.dot(coef_ref[...].astype(jnp.bfloat16), proto_ref[...],
                       preferred_element_type=jnp.float32)          # (TD, H*W)
    combined = combined.reshape(td * H, W)                           # row d*H+h

    # 2) Interpolation-matrix iotas: built once per step, reused for all TD.
    oh = jax.lax.broadcasted_iota(jnp.int32, (res, H), 0).astype(jnp.float32)
    hh = jax.lax.broadcasted_iota(jnp.int32, (res, H), 1).astype(jnp.float32)
    wwi = jax.lax.broadcasted_iota(jnp.int32, (W, res), 0).astype(jnp.float32)
    ow = jax.lax.broadcasted_iota(jnp.int32, (W, res), 1).astype(jnp.float32)

    rows = []
    for d in range(td):
        base = (j * td + d) * 4
        x1 = rois_ref[base + 0] * spatial_scale - 0.5
        y1 = rois_ref[base + 1] * spatial_scale - 0.5
        x2 = rois_ref[base + 2] * spatial_scale - 0.5
        y2 = rois_ref[base + 3] * spatial_scale - 0.5
        bin_w = (x2 - x1) / fres
        bin_h = (y2 - y1) / fres
        # TODO(synk): sampling_ratio=0 (adaptive ceil(bin) samples + averaging)
        #             not implemented; fixed to 1 sample per bin.

        # Row interpolation matrix Wy: (res, H).
        y = y1 + (oh + 0.5) * bin_h
        valid_y = (y >= -1.0) & (y <= fH)
        yc = jnp.maximum(y, 0.0)
        yl = jnp.minimum(jnp.floor(yc), fH - 1.0)
        yh = jnp.minimum(yl + 1.0, fH - 1.0)
        yc = jnp.where(yl >= fH - 1.0, yl, yc)
        ly = yc - yl
        wy = jnp.where(valid_y,
                       (1.0 - ly) * (hh == yl).astype(jnp.float32)
                       + ly * (hh == yh).astype(jnp.float32),
                       0.0)

        # Column interpolation matrix, built pre-transposed: WxT (W, res).
        xs = x1 + (ow + 0.5) * bin_w
        valid_x = (xs >= -1.0) & (xs <= fW)
        xc = jnp.maximum(xs, 0.0)
        xl = jnp.minimum(jnp.floor(xc), fW - 1.0)
        xh = jnp.minimum(xl + 1.0, fW - 1.0)
        xc = jnp.where(xl >= fW - 1.0, xl, xc)
        lx = xc - xl
        wxt = jnp.where(valid_x,
                        (1.0 - lx) * (wwi == xl).astype(jnp.float32)
                        + lx * (wwi == xh).astype(jnp.float32),
                        0.0)

        cmb = combined[d * H:(d + 1) * H, :]                              # (H, W)
        tmp = jnp.dot(wy, cmb, preferred_element_type=jnp.float32)        # (res, W)
        logits = jnp.dot(tmp, wxt, preferred_element_type=jnp.float32)    # (res, res)
        rows.append(jax.nn.sigmoid(logits).reshape(1, res * res))

    # Single lane-dense store for the whole detection block.
    out_ref[...] = jnp.concatenate(rows, axis=0).astype(out_ref.dtype)


def roi_align_mask_head(proto, batch_idx, rois, mask_coef, *,
                        res, spatial_scale, td=8):
    """Fused RoiAlign('avg', half_pixel, 1 sample/bin) + mask head + sigmoid."""
    B, nm, H, W = proto.shape
    D = rois.shape[0]
    K = B * nm
    td = min(td, D)
    d_pad = ((D + td - 1) // td) * td

    # Fold the per-detection proto-batch selection into batch-expanded
    # coefficients: coef_exp[d, b*nm + c] = (b == batch_idx[d]) * coef[d, c].
    onehot = jax.nn.one_hot(batch_idx, B, dtype=jnp.float32)               # (D, B)
    coef_exp = (onehot[:, :, None]
                * mask_coef.astype(jnp.float32)[:, None, :]).reshape(D, K)
    rois = rois.astype(jnp.float32)
    if d_pad != D:
        coef_exp = jnp.pad(coef_exp, ((0, d_pad - D), (0, 0)))
        rois = jnp.pad(rois, ((0, d_pad - D), (0, 0)))

    rois_flat = rois.reshape(d_pad * 4)                 # 1-D SMEM: no 2-D pad blowup
    proto_flat = proto.astype(jnp.bfloat16).reshape(K, H * W)   # bf16 MXU operand

    proto_bytes = K * H * W * 2
    est = 2 * proto_bytes + 4 * td * H * W * 4 + 2 * td * (K + res * res) * 4
    kernel = functools.partial(_roi_mask_kernel, td=td, res=res,
                               spatial_scale=float(spatial_scale), H=H, W=W)
    out = pl.pallas_call(
        kernel,
        grid=(d_pad // td,),
        in_specs=[
            pl.BlockSpec(memory_space=pltpu.MemorySpace.SMEM),      # rois (scalars)
            pl.BlockSpec((td, K), lambda j: (j, 0)),                # coeffs (VMEM)
            pl.BlockSpec((K, H * W), lambda j: (0, 0)),             # proto: resident
        ],
        out_specs=pl.BlockSpec((td, res * res), lambda j: (j, 0)),  # lane-dense out
        out_shape=jax.ShapeDtypeStruct((d_pad, res * res), jnp.float32),
        compiler_params=pltpu.CompilerParams(
            dimension_semantics=("parallel",),
            vmem_limit_bytes=_vmem_limit_bytes(est)),
    )(rois_flat, coef_exp, proto_flat)
    return out[:D]


# ----------------------------------------------------------------------------
# Deterministic stand-in for ORT NonMaxSuppression.
# TODO(synk): reference op is a random dynamic-size placeholder; replaced with a
#             deterministic fixed-size top-k (no IoU suppression / thresholds).
# ----------------------------------------------------------------------------
def deterministic_select(max_score, num_det):
    B, A = max_score.shape
    _, idx = jax.lax.top_k(max_score.reshape(B * A), num_det)
    X = (idx // A).astype(jnp.int32)
    Y = (idx % A).astype(jnp.int32)
    return X, Y


# ----------------------------------------------------------------------------
# Module wrapper
# ----------------------------------------------------------------------------
class ONNXOrtRoiAlignPallas:
    def __init__(self, max_obj=8, nc=8, mask_resolution=8, max_wh=640,
                 pooler_scale=0.25):
        self.max_obj = max_obj
        self.nc = nc
        self.mask_resolution = mask_resolution
        self.max_wh = max_wh              # unused (NMS placeholder, see TODO)
        self.pooler_scale = pooler_scale

    def __call__(self, x):
        pred, proto = x                                  # (B, A, F), (B, nm, H, W)
        B, A, F = pred.shape
        _, nm, H, W = proto.shape
        nc = self.nc
        res = self.mask_resolution
        D = self.max_obj

        # Pad anchors to a multiple of 128 so the preprocess grid always tiles.
        A_pad = ((A + 127) // 128) * 128
        if A_pad != A:
            pred = jnp.pad(pred, ((0, 0), (0, A_pad - A), (0, 0)))

        packed = preprocess(pred, nc, nm)                # (B, A_pad, 6+nm)

        max_score = packed[:, :, 4]                      # (B, A_pad)
        if A_pad != A:
            valid = (jnp.arange(A_pad) < A)[None, :]     # pad anchors can't win
            max_score = jnp.where(valid, max_score, -jnp.inf)

        X, Y = deterministic_select(max_score, D)
        sel = packed[X, Y, :]                            # (D, 6+nm)
        selected_boxes = sel[:, 0:4]
        selected_scores = sel[:, 4:5]
        selected_categories = sel[:, 5:6]
        selected_mask = sel[:, 6:6 + nm]

        masks = roi_align_mask_head(proto, X, selected_boxes, selected_mask,
                                    res=res, spatial_scale=self.pooler_scale)

        Xf = X.astype(jnp.float32)[:, None]
        return jnp.concatenate(
            [Xf, selected_boxes, selected_categories, selected_scores, masks],
            axis=1)


if __name__ == "__main__":
    key = jax.random.PRNGKey(0)
    B, A = 2, 64
    nc, nm = 8, 4
    ph = pw = 16
    res = 8
    max_obj = 8
    F = 5 + nc + nm

    k1, k2, k3, k4 = jax.random.split(key, 4)
    pred = jax.random.normal(k1, (B, A, F), dtype=jnp.float32)
    cxcy = jax.random.uniform(k2, (B, A, 2), minval=8.0, maxval=56.0)
    wh = jax.random.uniform(k3, (B, A, 2), minval=4.0, maxval=30.0)
    pred = pred.at[:, :, 0:2].set(cxcy)
    pred = pred.at[:, :, 2:4].set(wh)
    proto = jax.random.normal(k4, (B, nm, ph, pw), dtype=jnp.float32)

    model = ONNXOrtRoiAlignPallas(max_obj=max_obj, nc=nc, mask_resolution=res,
                                  pooler_scale=0.25)
    out = model((pred, proto))
    jax.block_until_ready(out)
    assert out.shape == (max_obj, 7 + res * res), out.shape
    assert bool(jnp.all(jnp.isfinite(out)))
    print("KERNEL_OK")
</pallas_src>

<mosaic_0001>
module attributes {stable_mosaic.version = 11 : i64} {
  func.func @_preprocess_kernel(%arg0: i32, %arg1: i32, %arg2: memref<1x128x17xf32, #tpu.memory_space<vmem>>, %arg3: memref<1x128x10xf32, #tpu.memory_space<vmem>>) attributes {dimension_semantics = [#tpu.dimension_semantics<parallel>, #tpu.dimension_semantics<parallel>], iteration_bounds = array<i64: 2, 1>, scalar_prefetch = 0 : i64, scratch_operands = 0 : i64, tpu.core_type = #tpu.core_type<tc>, window_params = [{transform_indices = @transform_0, window_bounds = array<i64: 1, 128, 17>}, {transform_indices = @transform_1, window_bounds = array<i64: 1, 128, 10>}]} {
    %c0 = arith.constant 0 : index
    %c0_0 = arith.constant 0 : index
    %c0_1 = arith.constant 0 : index
    %0 = vector.load %arg2[%c0, %c0_0, %c0_1] : memref<1x128x17xf32, #tpu.memory_space<vmem>>, vector<1x128x17xf32>
    %1 = vector.shape_cast %0 : vector<1x128x17xf32> to vector<128x17xf32>
    %2 = vector.extract_strided_slice %1 {offsets = [0, 0], sizes = [128, 2], strides = [1, 1]} : vector<128x17xf32> to vector<128x2xf32>
    %3 = vector.extract_strided_slice %1 {offsets = [0, 2], sizes = [128, 2], strides = [1, 1]} : vector<128x17xf32> to vector<128x2xf32>
    %4 = vector.extract_strided_slice %1 {offsets = [0, 4], sizes = [128, 1], strides = [1, 1]} : vector<128x17xf32> to vector<128x1xf32>
    %5 = vector.extract_strided_slice %1 {offsets = [0, 5], sizes = [128, 8], strides = [1, 1]} : vector<128x17xf32> to vector<128x8xf32>
    %6 = vector.broadcast %4 : vector<128x1xf32> to vector<128x8xf32>
    %7 = arith.mulf %5, %6 : vector<128x8xf32>
    %cst = arith.constant 5.000000e-01 : f32
    %8 = vector.broadcast %cst : f32 to vector<128x2xf32>
    %9 = arith.mulf %8, %3 : vector<128x2xf32>
    %10 = arith.subf %2, %9 : vector<128x2xf32>
    %11 = arith.addf %2, %9 : vector<128x2xf32>
    %cst_2 = arith.constant dense<0xFF800000> : vector<128xf32>
    %12 = vector.multi_reduction <maximumf>, %7, %cst_2 [1] : vector<128x8xf32> to vector<128xf32>
    %13 = vector.shape_cast %12 : vector<128xf32> to vector<128x1xf32>
    %14 = tpu.iota {dimensions = array<i32: 1>} : vector<128x8xi32>
    %15 = arith.sitofp %14 : vector<128x8xi32> to vector<128x8xf32>
    %16 = vector.broadcast %13 : vector<128x1xf32> to vector<128x8xf32>
    %17 = arith.cmpf oeq, %7, %16 : vector<128x8xf32>
    %cst_3 = arith.constant 8.000000e+00 : f32
    %18 = vector.broadcast %cst_3 : f32 to vector<128x8xf32>
    %19 = arith.select %17, %15, %18 : vector<128x8xi1>, vector<128x8xf32>
    %cst_4 = arith.constant dense<0x7F800000> : vector<128xf32>
    %20 = vector.multi_reduction <minimumf>, %19, %cst_4 [1] : vector<128x8xf32> to vector<128xf32>
    %21 = vector.shape_cast %20 : vector<128xf32> to vector<128x1xf32>
    %22 = vector.extract_strided_slice %1 {offsets = [0, 13], sizes = [128, 4], strides = [1, 1]} : vector<128x17xf32> to vector<128x4xf32>
    %23 = tpu.concatenate %10, %11, %13, %21, %22 in 1 : vector<128x2xf32>, vector<128x2xf32>, vector<128x1xf32>, vector<128x1xf32>, vector<128x4xf32> -> vector<128x10xf32>
    %c0_5 = arith.constant 0 : index
    %c0_6 = arith.constant 0 : index
    %c0_7 = arith.constant 0 : index
    %24 = vector.load %arg3[%c0_5, %c0_6, %c0_7] : memref<1x128x10xf32, #tpu.memory_space<vmem>>, vector<1x128x10xf32>
    %25 = vector.shape_cast %24 : vector<1x128x10xf32> to vector<128x10xf32>
    %26 = vector.shape_cast %23 : vector<128x10xf32> to vector<1x128x10xf32>
    tpu.vector_store %arg3[%c0_5, %c0_6, %c0_7], %26 {strides = array<i32>} : memref<1x128x10xf32, #tpu.memory_space<vmem>>, vector<1x128x10xf32>,
    return
  }
  func.func @transform_0(%arg0: i32, %arg1: i32) -> (i32, i32, i32) {
    %c0_i32 = arith.constant 0 : i32
    %c0_i32_0 = arith.constant 0 : i32
    return %arg0, %arg1, %c0_i32 : i32, i32, i32
  }
  func.func @transform_1(%arg0: i32, %arg1: i32) -> (i32, i32, i32) {
    %c0_i32 = arith.constant 0 : i32
    %c0_i32_0 = arith.constant 0 : i32
    return %arg0, %arg1, %c0_i32 : i32, i32, i32
  }
}

</mosaic_0001>

<llo_original>
// kernel: tpu_custom_call.1
$region0: #{tpu_custom_call.1}
  #allocation0 [shape = 'u32[]', space=smem, size = 0x4, offset = 0x4, fixed_abs, tag = 'smem constant byte address 0x4 - core index']
  #allocation1 [shape = 'u32[144,128]{1,0:T(1,128)}', space=vmem, size = 0x12000, scoped, tag = 'internal scratch']
  %s0 = inlined_call_operand.vmem [shape: f32[2,128,17], index: 0, kind: input, shape index: {}]
  %s1 = inlined_call_operand.vmem [shape: f32[2,128,10], index: 1, kind: output, shape index: {}]
  %s2 = sld [smem:[#allocation0]]
  $region37: #{tpu_custom_call.1} parent=0
    _
  %s4 = ssub.s32 1, %s2
  %s5 = scalar_select 0, %s4, %s2
  loop: start=0, step=1, limit=4
  $region2: #{tpu_custom_call.1} parent=0 // loop_pre_header
    _
  $region3: #{tpu_custom_call.1} parent=0 // loop_header
    %s7 = sphi 0, %s11
    %p8 = scmp.ge.s32.totalorder %s7, 4
    %s14 = sphi 0, %s26
    %s15 = sphi 0, %s22
    %s16 = sphi 0, %s14
    %s17 = sphi 0, %s15
    %s18 = sphi 0, %s16
    %s19 = sphi 0, %s17
    %s31 = sphi 0, %s33
    %s34 = sphi 0, %s31
    %s35 = sphi 0, %s34
    %s51 = sphi 0, %s35
    %s59 = sphi 0, %s61
    %s62 = sphi 0, %s59
    %s63 = sphi 0, %s62
    %s79 = sphi 0, %s63
  $region4: #{tpu_custom_call.1} parent=0 // loop_header_branch
    %10 = sbr.rel (%p8) target = $region8
  $region5: #{tpu_custom_call.1} parent=0 // loop_body
    %s12 = ssub.s32 %s7, 1
    %s13 = ssub.s32 %s7, 2
    %s20 = sadd.s32 1, %s15
    %p21 = scmp.ge.s32.totalorder %s20, 1
    %s22 = scalar_select %p21, 0, %s20
    %s23 = sadd.s32 1, %s14
    %s24 = scalar_select %p21, %s23, %s14
    %p25 = scmp.ge.s32.totalorder %s24, 2
    %s26 = scalar_select %p25, 0, %s24
    %s27 = ssub.s32 %s14, %s26
    %s28 = ssub.s32 %s15, %s22
    %s29 = sor.u32 %s27, %s28
    %p30 = scmp.eq.s32.totalorder %s29, 0
    %s32 = sadd.s32 %s31, 1
    %s33 = scalar_select %p30, %s31, %s32
    %p36 = pneg %p30
    %p37 = scmp.eq.s32.totalorder %s7, 1
    %p38 = por %p36, %p37
    %p39 = scmp.ne.s32.totalorder %s31, %s34
    %p40 = scmp.eq.s32.totalorder %s7, 0
    %p41 = por %p39, %p40
    %p42 = scmp.ne.s32.totalorder %s31, %s34
    %p43 = scmp.eq.s32.totalorder %s12, 1
    %p44 = por %p42, %p43
    %p45 = scmp.ne.s32.totalorder %s34, %s35
    %p46 = scmp.eq.s32.totalorder %s12, 0
    %p47 = por %p45, %p46
    %p48 = scmp.ne.s32.totalorder %s34, %s35
    %p49 = scmp.eq.s32.totalorder %s13, 1
    %p50 = por %p48, %p49
    %p52 = scmp.ne.s32.totalorder %s35, %s51
    %p53 = scmp.eq.s32.totalorder %s13, 0
    %p54 = por %p52, %p53
    %s55 = ssub.s32 %s14, %s26
    %s56 = ssub.s32 %s15, %s22
    %s57 = sor.u32 %s55, %s56
    %p58 = scmp.eq.s32.totalorder %s57, 0
    %s60 = sadd.s32 %s59, 1
    %s61 = scalar_select %p58, %s59, %s60
    %p64 = pneg %p58
    %p65 = scmp.eq.s32.totalorder %s7, 1
    %p66 = por %p64, %p65
    %p67 = scmp.ne.s32.totalorder %s59, %s62
    %p68 = scmp.eq.s32.totalorder %s7, 0
    %p69 = por %p67, %p68
    %p70 = scmp.ne.s32.totalorder %s59, %s62
    %p71 = scmp.eq.s32.totalorder %s12, 1
    %p72 = por %p70, %p71
    %p73 = scmp.ne.s32.totalorder %s62, %s63
    %p74 = scmp.eq.s32.totalorder %s12, 0
    %p75 = por %p73, %p74
    %p76 = scmp.ne.s32.totalorder %s62, %s63
    %p77 = scmp.eq.s32.totalorder %s13, 1
    %p78 = por %p76, %p77
    %p80 = scmp.ne.s32.totalorder %s63, %s79
    %p81 = scmp.eq.s32.totalorder %s13, 0
    %p82 = por %p80, %p81
    %p83 = scmp.le.s32.totalorder 1, %s7
    %p84 = scmp.lt.s32.totalorder %s7, 3
    %p85 = pnand %p83, %p84
    %p86 = pneg %p85
    // Predicated region
    $region9: #{tpu_custom_call.1} parent=5 // pred_check
      _
    $region10: #{tpu_custom_call.1} parent=5 // pred_check_branch
      %88 = sbr.rel (%p85) target = $region12
    $region11: #{tpu_custom_call.1} parent=5 // pred_region
      %s89 = ssub.s32 %s7, 1
    $region12: #{tpu_custom_call.1} parent=5 // pred_fallthru
      _
    %p90 = scmp.lt.s32.totalorder %s7, 2
    // Predicated region
    $region13: #{tpu_custom_call.1} parent=5 // pred_check
      %p91 = pneg %p90
    $region14: #{tpu_custom_call.1} parent=5 // pred_check_branch
      %93 = sbr.rel (%p91) target = $region16
    $region15: #{tpu_custom_call.1} parent=5 // pred_region
      // Predicated region
      $region17: #{tpu_custom_call.1} parent=15 // pred_check
        %p94 = pneg %p41
      $region18: #{tpu_custom_call.1} parent=15 // pred_check_branch
        %96 = sbr.rel (%p94) target = $region20
      $region19: #{tpu_custom_call.1} parent=15 // pred_region
        %s97 = smul.u32 16, %s15
        %p98 = scmp.lt.s32.totalorder %s14, 1
        %s99 = scalar_select %p98, %s14, 1
        %p100 = scmp.lt.s32.totalorder %s97, 15
        %s101 = scalar_select %p100, %s97, 15
        %s102 = smul.addr %s99, 16
        %s103 = sadd.s32 %s101, %s102
        %s104 = smul.addr %s103, 8
        %s105 = scalar_lea.vmem %s0, %s104
        %s106 = smul.u32 16, %s15
      $region20: #{tpu_custom_call.1} parent=15 // pred_fallthru
        _
    $region16: #{tpu_custom_call.1} parent=5 // pred_fallthru
      _
    %p107 = scmp.le.s32.totalorder 1, %s7
    %p108 = scmp.lt.s32.totalorder %s7, 3
    %p109 = pnand %p107, %p108
    %p110 = pneg %p109
    // Predicated region
    $region21: #{tpu_custom_call.1} parent=5 // pred_check
      _
    $region22: #{tpu_custom_call.1} parent=5 // pred_check_branch
      %112 = sbr.rel (%p109) target = $region24
    $region23: #{tpu_custom_call.1} parent=5 // pred_region
      %s113 = ssub.s32 %s7, 1
      %s114 = smul.u32 16, %s17
      %p115 = scmp.lt.s32.totalorder %s16, 1
      %s116 = scalar_select %p115, %s16, 1
      %p117 = scmp.lt.s32.totalorder %s114, 15
      %s118 = scalar_select %p117, %s114, 15
      %s119 = smul.addr %s116, 16
      %s120 = sadd.s32 %s118, %s119
      %s121 = smul.addr %s120, 8
      %s122 = scalar_lea.vmem %s0, %s121
      %p123 = pneg %p47
      %p124 = pneg %p44
      %p125 = pneg %p75
      %p126 = pneg %p72
      %s127 = smul.u32 16, %s17
      %p128 = scmp.lt.s32.totalorder %s16, 1
      %s129 = scalar_select %p128, %s16, 1
      %p130 = scmp.lt.s32.totalorder %s127, 15
      %s131 = scalar_select %p130, %s127, 15
      %s132 = smul.addr %s129, 16
      %s133 = sadd.s32 %s131, %s132
      %s134 = smul.addr %s133, 8
      %s135 = scalar_lea.vmem %s1, %s134
      %s136 = smul.u32 16, %s17
      %p137 = scmp.lt.s32.totalorder %s16, 1
      %s138 = scalar_select %p137, %s16, 1
      %p139 = scmp.lt.s32.totalorder %s136, 15
      %s140 = scalar_select %p139, %s136, 15
      %s141 = smul.addr %s138, 16
      %s142 = sadd.s32 %s140, %s141
      %s143 = smul.addr %s142, 8
      %s144 = scalar_lea.vmem %s0, %s143
      %s145 = smul.u32 16, %s17
      %s146 = smul.u32 16, %s17
      %p147 = scmp.lt.s32.totalorder %s16, 1
      %s148 = scalar_select %p147, %s16, 1
      %p149 = scmp.lt.s32.totalorder %s146, 15
      %s150 = scalar_select %p149, %s146, 15
      %s151 = smul.addr %s148, 16
      %s152 = sadd.s32 %s150, %s151
      %s153 = smul.addr %s152, 8
      %s154 = scalar_lea.vmem %s1, %s153
      %s155 = smul.u32 16, %s17
      %v156 = vld [vmem:[%s144] sm:$0xff]
      %v157 = vld [vmem:[%s144 + $0x8] sm:$0xff]
      %v158 = vld [vmem:[%s144 + $0x10] sm:$0xff]
      %v159 = vld [vmem:[%s144 + $0x18] sm:$0xff]
      %v160 = vld [vmem:[%s144 + $0x20] sm:$0xff]
      %v161 = vld [vmem:[%s144 + $0x28] sm:$0xff]
      %v162 = vld [vmem:[%s144 + $0x30] sm:$0xff]
      %v163 = vld [vmem:[%s144 + $0x38] sm:$0xff]
      %v164 = vld [vmem:[%s144 + $0x40] sm:$0xff]
      %v165 = vld [vmem:[%s144 + $0x48] sm:$0xff]
      %v166 = vld [vmem:[%s144 + $0x50] sm:$0xff]
      %v167 = vld [vmem:[%s144 + $0x58] sm:$0xff]
      %v168 = vld [vmem:[%s144 + $0x60] sm:$0xff]
      %v169 = vld [vmem:[%s144 + $0x68] sm:$0xff]
      %v170 = vld [vmem:[%s144 + $0x70] sm:$0xff]
      %v171 = vld [vmem:[%s144 + $0x78] sm:$0xff]
      %173 = vset.pattern.permute.xlu0 4
      %174 = vperm.xlu0 %173, %v156
      %v175 = vpop.permute.xlu0 %174
      %178 = vset.pattern.permute.xlu0 4
      %179 = vperm.xlu0 %178, %v157
      %v180 = vpop.permute.xlu0 %179
      %183 = vset.pattern.permute.xlu0 4
      %184 = vperm.xlu0 %183, %v158
      %v185 = vpop.permute.xlu0 %184
      %188 = vset.pattern.permute.xlu0 4
      %189 = vperm.xlu0 %188, %v159
      %v190 = vpop.permute.xlu0 %189
      %193 = vset.pattern.permute.xlu0 4
      %194 = vperm.xlu0 %193, %v160
      %v195 = vpop.permute.xlu0 %194
      %198 = vset.pattern.permute.xlu0 4
      %199 = vperm.xlu0 %198, %v161
      %v200 = vpop.permute.xlu0 %199
      %203 = vset.pattern.permute.xlu0 4
      %204 = vperm.xlu0 %203, %v162
      %v205 = vpop.permute.xlu0 %204
      %208 = vset.pattern.permute.xlu0 4
      %209 = vperm.xlu0 %208, %v163
      %v210 = vpop.permute.xlu0 %209
      %213 = vset.pattern.permute.xlu0 4
      %214 = vperm.xlu0 %213, %v164
      %v215 = vpop.permute.xlu0 %214
      %218 = vset.pattern.permute.xlu0 4
      %219 = vperm.xlu0 %218, %v165
      %v220 = vpop.permute.xlu0 %219
      %223 = vset.pattern.permute.xlu0 4
      %224 = vperm.xlu0 %223, %v166
      %v225 = vpop.permute.xlu0 %224
      %228 = vset.pattern.permute.xlu0 4
      %229 = vperm.xlu0 %228, %v167
      %v230 = vpop.permute.xlu0 %229
      %233 = vset.pattern.permute.xlu0 4
      %234 = vperm.xlu0 %233, %v168
      %v235 = vpop.permute.xlu0 %234
      %238 = vset.pattern.permute.xlu0 4
      %239 = vperm.xlu0 %238, %v169
      %v240 = vpop.permute.xlu0 %239
      %243 = vset.pattern.permute.xlu0 4
      %244 = vperm.xlu0 %243, %v170
      %v245 = vpop.permute.xlu0 %244
      %248 = vset.pattern.permute.xlu0 4
      %249 = vperm.xlu0 %248, %v171
      %v250 = vpop.permute.xlu0 %249
      %v252 = vmul.f32 %v156, %v175
      %v253 = vmul.f32 %v157, %v180
      %v254 = vmul.f32 %v158, %v185
      %v255 = vmul.f32 %v159, %v190
      %v256 = vmul.f32 %v160, %v195
      %v257 = vmul.f32 %v161, %v200
      %v258 = vmul.f32 %v162, %v205
      %v259 = vmul.f32 %v163, %v210
      %v260 = vmul.f32 %v164, %v215
      %v261 = vmul.f32 %v165, %v220
      %v262 = vmul.f32 %v166, %v225
      %v263 = vmul.f32 %v167, %v230
      %v264 = vmul.f32 %v168, %v235
      %v265 = vmul.f32 %v169, %v240
      %v266 = vmul.f32 %v170, %v245
      %v267 = vmul.f32 %v171, %v250
      %v268 = vmul.f32 %v156, 0.5
      %v269 = vmul.f32 %v157, 0.5
      %v270 = vmul.f32 %v158, 0.5
      %v271 = vmul.f32 %v159, 0.5
      %v272 = vmul.f32 %v160, 0.5
      %v273 = vmul.f32 %v161, 0.5
      %v274 = vmul.f32 %v162, 0.5
      %v275 = vmul.f32 %v163, 0.5
      %v276 = vmul.f32 %v164, 0.5
      %v277 = vmul.f32 %v165, 0.5
      %v278 = vmul.f32 %v166, 0.5
      %v279 = vmul.f32 %v167, 0.5
      %v280 = vmul.f32 %v168, 0.5
      %v281 = vmul.f32 %v169, 0.5
      %v282 = vmul.f32 %v170, 0.5
      %v283 = vmul.f32 %v171, 0.5
      %300 = vrot.lane.b32.xlu0 %v268, 126
      %v301 = vpop.permute.xlu0 %300
      %302 = vrot.lane.b32.xlu0 %v269, 126
      %v303 = vpop.permute.xlu0 %302
      %304 = vrot.lane.b32.xlu0 %v270, 126
      %v305 = vpop.permute.xlu0 %304
      %306 = vrot.lane.b32.xlu0 %v271, 126
      %v307 = vpop.permute.xlu0 %306
      %308 = vrot.lane.b32.xlu0 %v272, 126
      %v309 = vpop.permute.xlu0 %308
      %310 = vrot.lane.b32.xlu0 %v273, 126
      %v311 = vpop.permute.xlu0 %310
      %312 = vrot.lane.b32.xlu0 %v274, 126
      %v313 = vpop.permute.xlu0 %312
      %314 = vrot.lane.b32.xlu0 %v275, 126
      %v315 = vpop.permute.xlu0 %314
      %316 = vrot.lane.b32.xlu0 %v276, 126
      %v317 = vpop.permute.xlu0 %316
      %318 = vrot.lane.b32.xlu0 %v277, 126
      %v319 = vpop.permute.xlu0 %318
      %320 = vrot.lane.b32.xlu0 %v278, 126
      %v321 = vpop.permute.xlu0 %320
      %322 = vrot.lane.b32.xlu0 %v279, 126
      %v323 = vpop.permute.xlu0 %322
      %324 = vrot.lane.b32.xlu0 %v280, 126
      %v325 = vpop.permute.xlu0 %324
      %326 = vrot.lane.b32.xlu0 %v281, 126
      %v327 = vpop.permute.xlu0 %326
      %328 = vrot.lane.b32.xlu0 %v282, 126
      %v329 = vpop.permute.xlu0 %328
      %330 = vrot.lane.b32.xlu0 %v283, 126
      %v331 = vpop.permute.xlu0 %330
      %v348 = vsub.f32 %v156, %v301
      %v349 = vsub.f32 %v157, %v303
      %v350 = vsub.f32 %v158, %v305
      %v351 = vsub.f32 %v159, %v307
      %v352 = vsub.f32 %v160, %v309
      %v353 = vsub.f32 %v161, %v311
      %v354 = vsub.f32 %v162, %v313
      %v355 = vsub.f32 %v163, %v315
      %v356 = vsub.f32 %v164, %v317
      %v357 = vsub.f32 %v165, %v319
      %v358 = vsub.f32 %v166, %v321
      %v359 = vsub.f32 %v167, %v323
      %v360 = vsub.f32 %v168, %v325
      %v361 = vsub.f32 %v169, %v327
      %v362 = vsub.f32 %v170, %v329
      %v363 = vsub.f32 %v171, %v331
      %v364 = vadd.f32 %v156, %v301
      %v365 = vadd.f32 %v157, %v303
      %v366 = vadd.f32 %v158, %v305
      %v367 = vadd.f32 %v159, %v307
      %v368 = vadd.f32 %v160, %v309
      %v369 = vadd.f32 %v161, %v311
      %v370 = vadd.f32 %v162, %v313
      %v371 = vadd.f32 %v163, %v315
      %v372 = vadd.f32 %v164, %v317
      %v373 = vadd.f32 %v165, %v319
      %v374 = vadd.f32 %v166, %v321
      %v375 = vadd.f32 %v167, %v323
      %v376 = vadd.f32 %v168, %v325
      %v377 = vadd.f32 %v169, %v327
      %v378 = vadd.f32 %v170, %v329
      %v379 = vadd.f32 %v171, %v331
      %vm380 = vcmask 105512
      %v381 = vsel %vm380, %v252, -inf
      %382 = vmax.xlane.f32.xlu0 %v381
      %v383 = vpop.xlane.xlu0 %382
      %v384 = vsel %vm380, %v253, -inf
      %385 = vmax.xlane.f32.xlu0 %v384
      %v386 = vpop.xlane.xlu0 %385
      %v387 = vsel %vm380, %v254, -inf
      %388 = vmax.xlane.f32.xlu0 %v387
      %v389 = vpop.xlane.xlu0 %388
      %v390 = vsel %vm380, %v255, -inf
      %391 = vmax.xlane.f32.xlu0 %v390
      %v392 = vpop.xlane.xlu0 %391
      %v393 = vsel %vm380, %v256, -inf
      %394 = vmax.xlane.f32.xlu0 %v393
      %v395 = vpop.xlane.xlu0 %394
      %v396 = vsel %vm380, %v257, -inf
      %397 = vmax.xlane.f32.xlu0 %v396
      %v398 = vpop.xlane.xlu0 %397
      %v399 = vsel %vm380, %v258, -inf
      %400 = vmax.xlane.f32.xlu0 %v399
      %v401 = vpop.xlane.xlu0 %400
      %v402 = vsel %vm380, %v259, -inf
      %403 = vmax.xlane.f32.xlu0 %v402
      %v404 = vpop.xlane.xlu0 %403
      %v405 = vsel %vm380, %v260, -inf
      %406 = vmax.xlane.f32.xlu0 %v405
      %v407 = vpop.xlane.xlu0 %406
      %v408 = vsel %vm380, %v261, -inf
      %409 = vmax.xlane.f32.xlu0 %v408
      %v410 = vpop.xlane.xlu0 %409
      %v411 = vsel %vm380, %v262, -inf
      %412 = vmax.xlane.f32.xlu0 %v411
      %v413 = vpop.xlane.xlu0 %412
      %v414 = vsel %vm380, %v263, -inf
      %415 = vmax.xlane.f32.xlu0 %v414
      %v416 = vpop.xlane.xlu0 %415
      %v417 = vsel %vm380, %v264, -inf
      %418 = vmax.xlane.f32.xlu0 %v417
      %v419 = vpop.xlane.xlu0 %418
      %v420 = vsel %vm380, %v265, -inf
      %421 = vmax.xlane.f32.xlu0 %v420
      %v422 = vpop.xlane.xlu0 %421
      %v423 = vsel %vm380, %v266, -inf
      %424 = vmax.xlane.f32.xlu0 %v423
      %v425 = vpop.xlane.xlu0 %424
      %v426 = vsel %vm380, %v267, -inf
      %427 = vmax.xlane.f32.xlu0 %v426
      %v428 = vpop.xlane.xlu0 %427
      %v429 = vlaneseq
      %v430 = vand.u32 %v429, 127
      %v431 = vcvt.s32.f32 %v430
      %vm432 = vcmp.eq.f32.partialorder %v252, %v383
      %vm433 = vcmp.eq.f32.partialorder %v253, %v386
      %vm434 = vcmp.eq.f32.partialorder %v254, %v389
      %vm435 = vcmp.eq.f32.partialorder %v255, %v392
      %vm436 = vcmp.eq.f32.partialorder %v256, %v395
      %vm437 = vcmp.eq.f32.partialorder %v257, %v398
      %vm438 = vcmp.eq.f32.partialorder %v258, %v401
      %vm439 = vcmp.eq.f32.partialorder %v259, %v404
      %vm440 = vcmp.eq.f32.partialorder %v260, %v407
      %vm441 = vcmp.eq.f32.partialorder %v261, %v410
      %vm442 = vcmp.eq.f32.partialorder %v262, %v413
      %vm443 = vcmp.eq.f32.partialorder %v263, %v416
      %vm444 = vcmp.eq.f32.partialorder %v264, %v419
      %vm445 = vcmp.eq.f32.partialorder %v265, %v422
      %vm446 = vcmp.eq.f32.partialorder %v266, %v425
      %vm447 = vcmp.eq.f32.partialorder %v267, %v428
      %449 = vrot.lane.b32.xlu0 %v431, 5
      %v450 = vpop.permute.xlu0 %449
      %v452 = vsel %vm432, %v450, 8.0
      %v453 = vsel %vm433, %v450, 8.0
      %v454 = vsel %vm434, %v450, 8.0
      %v455 = vsel %vm435, %v450, 8.0
      %v456 = vsel %vm436, %v450, 8.0
      %v457 = vsel %vm437, %v450, 8.0
      %v458 = vsel %vm438, %v450, 8.0
      %v459 = vsel %vm439, %v450, 8.0
      %v460 = vsel %vm440, %v450, 8.0
      %v461 = vsel %vm441, %v450, 8.0
      %v462 = vsel %vm442, %v450, 8.0
      %v463 = vsel %vm443, %v450, 8.0
      %v464 = vsel %vm444, %v450, 8.0
      %v465 = vsel %vm445, %v450, 8.0
      %v466 = vsel %vm446, %v450, 8.0
      %v467 = vsel %vm447, %v450, 8.0
      %v468 = vsel %vm380, %v452, inf
      %469 = vmin.xlane.f32.xlu0 %v468
      %v470 = vpop.xlane.xlu0 %469
      %v471 = vsel %vm380, %v453, inf
      %472 = vmin.xlane.f32.xlu0 %v471
      %v473 = vpop.xlane.xlu0 %472
      %v474 = vsel %vm380, %v454, inf
      %475 = vmin.xlane.f32.xlu0 %v474
      %v476 = vpop.xlane.xlu0 %475
      %v477 = vsel %vm380, %v455, inf
      %478 = vmin.xlane.f32.xlu0 %v477
      %v479 = vpop.xlane.xlu0 %478
      %v480 = vsel %vm380, %v456, inf
      %481 = vmin.xlane.f32.xlu0 %v480
      %v482 = vpop.xlane.xlu0 %481
      %v483 = vsel %vm380, %v457, inf
      %484 = vmin.xlane.f32.xlu0 %v483
      %v485 = vpop.xlane.xlu0 %484
      %v486 = vsel %vm380, %v458, inf
      %487 = vmin.xlane.f32.xlu0 %v486
      %v488 = vpop.xlane.xlu0 %487
      %v489 = vsel %vm380, %v459, inf
      %490 = vmin.xlane.f32.xlu0 %v489
      %v491 = vpop.xlane.xlu0 %490
      %v492 = vsel %vm380, %v460, inf
      %493 = vmin.xlane.f32.xlu0 %v492
      %v494 = vpop.xlane.xlu0 %493
      %v495 = vsel %vm380, %v461, inf
      %496 = vmin.xlane.f32.xlu0 %v495
      %v497 = vpop.xlane.xlu0 %496
      %v498 = vsel %vm380, %v462, inf
      %499 = vmin.xlane.f32.xlu0 %v498
      %v500 = vpop.xlane.xlu0 %499
      %v501 = vsel %vm380, %v463, inf
      %502 = vmin.xlane.f32.xlu0 %v501
      %v503 = vpop.xlane.xlu0 %502
      %v504 = vsel %vm380, %v464, inf
      %505 = vmin.xlane.f32.xlu0 %v504
      %v506 = vpop.xlane.xlu0 %505
      %v507 = vsel %vm380, %v465, inf
      %508 = vmin.xlane.f32.xlu0 %v507
      %v509 = vpop.xlane.xlu0 %508
      %v510 = vsel %vm380, %v466, inf
      %511 = vmin.xlane.f32.xlu0 %v510
      %v512 = vpop.xlane.xlu0 %511
      %v513 = vsel %vm380, %v467, inf
      %514 = vmin.xlane.f32.xlu0 %v513
      %v515 = vpop.xlane.xlu0 %514
      %532 = vrot.lane.b32.xlu0 %v364, 2
      %v533 = vpop.permute.xlu0 %532
      %534 = vrot.lane.b32.xlu0 %v365, 2
      %v535 = vpop.permute.xlu0 %534
      %536 = vrot.lane.b32.xlu0 %v366, 2
      %v537 = vpop.permute.xlu0 %536
      %538 = vrot.lane.b32.xlu0 %v367, 2
      %v539 = vpop.permute.xlu0 %538
      %540 = vrot.lane.b32.xlu0 %v368, 2
      %v541 = vpop.permute.xlu0 %540
      %542 = vrot.lane.b32.xlu0 %v369, 2
      %v543 = vpop.permute.xlu0 %542
      %544 = vrot.lane.b32.xlu0 %v370, 2
      %v545 = vpop.permute.xlu0 %544
      %546 = vrot.lane.b32.xlu0 %v371, 2
      %v547 = vpop.permute.xlu0 %546
      %548 = vrot.lane.b32.xlu0 %v372, 2
      %v549 = vpop.permute.xlu0 %548
      %550 = vrot.lane.b32.xlu0 %v373, 2
      %v551 = vpop.permute.xlu0 %550
      %552 = vrot.lane.b32.xlu0 %v374, 2
      %v553 = vpop.permute.xlu0 %552
      %554 = vrot.lane.b32.xlu0 %v375, 2
      %v555 = vpop.permute.xlu0 %554
      %556 = vrot.lane.b32.xlu0 %v376, 2
      %v557 = vpop.permute.xlu0 %556
      %558 = vrot.lane.b32.xlu0 %v377, 2
      %v559 = vpop.permute.xlu0 %558
      %560 = vrot.lane.b32.xlu0 %v378, 2
      %v561 = vpop.permute.xlu0 %560
      %562 = vrot.lane.b32.xlu0 %v379, 2
      %v563 = vpop.permute.xlu0 %562
      %580 = vrot.lane.b32.xlu0 %v156, 121
      %v581 = vpop.permute.xlu0 %580
      %582 = vrot.lane.b32.xlu0 %v157, 121
      %v583 = vpop.permute.xlu0 %582
      %584 = vrot.lane.b32.xlu0 %v158, 121
      %v585 = vpop.permute.xlu0 %584
      %586 = vrot.lane.b32.xlu0 %v159, 121
      %v587 = vpop.permute.xlu0 %586
      %588 = vrot.lane.b32.xlu0 %v160, 121
      %v589 = vpop.permute.xlu0 %588
      %590 = vrot.lane.b32.xlu0 %v161, 121
      %v591 = vpop.permute.xlu0 %590
      %592 = vrot.lane.b32.xlu0 %v162, 121
      %v593 = vpop.permute.xlu0 %592
      %594 = vrot.lane.b32.xlu0 %v163, 121
      %v595 = vpop.permute.xlu0 %594
      %596 = vrot.lane.b32.xlu0 %v164, 121
      %v597 = vpop.permute.xlu0 %596
      %598 = vrot.lane.b32.xlu0 %v165, 121
      %v599 = vpop.permute.xlu0 %598
      %600 = vrot.lane.b32.xlu0 %v166, 121
      %v601 = vpop.permute.xlu0 %600
      %602 = vrot.lane.b32.xlu0 %v167, 121
      %v603 = vpop.permute.xlu0 %602
      %604 = vrot.lane.b32.xlu0 %v168, 121
      %v605 = vpop.permute.xlu0 %604
      %606 = vrot.lane.b32.xlu0 %v169, 121
      %v607 = vpop.permute.xlu0 %606
      %608 = vrot.lane.b32.xlu0 %v170, 121
      %v609 = vpop.permute.xlu0 %608
      %610 = vrot.lane.b32.xlu0 %v171, 121
      %v611 = vpop.permute.xlu0 %610
      %vm628 = vcmask 15360
      %v629 = vsel %vm628, %v348, %v533
      %v630 = vsel %vm628, %v349, %v535
      %v631 = vsel %vm628, %v350, %v537
      %v632 = vsel %vm628, %v351, %v539
      %v633 = vsel %vm628, %v352, %v541
      %v634 = vsel %vm628, %v353, %v543
      %v635 = vsel %vm628, %v354, %v545
      %v636 = vsel %vm628, %v355, %v547
      %v637 = vsel %vm628, %v356, %v549
      %v638 = vsel %vm628, %v357, %v551
      %v639 = vsel %vm628, %v358, %v553
      %v640 = vsel %vm628, %v359, %v555
      %v641 = vsel %vm628, %v360, %v557
      %v642 = vsel %vm628, %v361, %v559
      %v643 = vsel %vm628, %v362, %v561
      %v644 = vsel %vm628, %v363, %v563
      %vm645 = vcmask 31744
      %v646 = vsel %vm645, %v629, %v383
      %v647 = vsel %vm645, %v630, %v386
      %v648 = vsel %vm645, %v631, %v389
      %v649 = vsel %vm645, %v632, %v392
      %v650 = vsel %vm645, %v633, %v395
      %v651 = vsel %vm645, %v634, %v398
      %v652 = vsel %vm645, %v635, %v401
      %v653 = vsel %vm645, %v636, %v404
      %v654 = vsel %vm645, %v637, %v407
      %v655 = vsel %vm645, %v638, %v410
      %v656 = vsel %vm645, %v639, %v413
      %v657 = vsel %vm645, %v640, %v416
      %v658 = vsel %vm645, %v641, %v419
      %v659 = vsel %vm645, %v642, %v422
      %v660 = vsel %vm645, %v643, %v425
      %v661 = vsel %vm645, %v644, %v428
      %vm662 = vcmask 39936
      %v663 = vsel %vm662, %v646, %v470
      %v664 = vsel %vm662, %v647, %v473
      %v665 = vsel %vm662, %v648, %v476
      %v666 = vsel %vm662, %v649, %v479
      %v667 = vsel %vm662, %v650, %v482
      %v668 = vsel %vm662, %v651, %v485
      %v669 = vsel %vm662, %v652, %v488
      %v670 = vsel %vm662, %v653, %v491
      %v671 = vsel %vm662, %v654, %v494
      %v672 = vsel %vm662, %v655, %v497
      %v673 = vsel %vm662, %v656, %v500
      %v674 = vsel %vm662, %v657, %v503
      %v675 = vsel %vm662, %v658, %v506
      %v676 = vsel %vm662, %v659, %v509
      %v677 = vsel %vm662, %v660, %v512
      %v678 = vsel %vm662, %v661, %v515
      %vm679 = vcmask 48128
      %v680 = vsel %vm679, %v663, %v581
      %v681 = vsel %vm679, %v664, %v583
      %v682 = vsel %vm679, %v665, %v585
      %v683 = vsel %vm679, %v666, %v587
      %v684 = vsel %vm679, %v667, %v589
      %v685 = vsel %vm679, %v668, %v591
      %v686 = vsel %vm679, %v669, %v593
      %v687 = vsel %vm679, %v670, %v595
      %v688 = vsel %vm679, %v671, %v597
      %v689 = vsel %vm679, %v672, %v599
      %v690 = vsel %vm679, %v673, %v601
      %v691 = vsel %vm679, %v674, %v603
      %v692 = vsel %vm679, %v675, %v605
      %v693 = vsel %vm679, %v676, %v607
      %v694 = vsel %vm679, %v677, %v609
      %v695 = vsel %vm679, %v678, %v611
      %vm696 = vcmask 80896
      %697 = vst.msk [vmem:[%s154] sm:$0xff] %vm696, %v680
      %698 = vst.msk [vmem:[%s154 + $0x8] sm:$0xff] %vm696, %v681
      %699 = vst.msk [vmem:[%s154 + $0x10] sm:$0xff] %vm696, %v682
      %700 = vst.msk [vmem:[%s154 + $0x18] sm:$0xff] %vm696, %v683
      %701 = vst.msk [vmem:[%s154 + $0x20] sm:$0xff] %vm696, %v684
      %702 = vst.msk [vmem:[%s154 + $0x28] sm:$0xff] %vm696, %v685
      %703 = vst.msk [vmem:[%s154 + $0x30] sm:$0xff] %vm696, %v686
      %704 = vst.msk [vmem:[%s154 + $0x38] sm:$0xff] %vm696, %v687
      %705 = vst.msk [vmem:[%s154 + $0x40] sm:$0xff] %vm696, %v688
      %706 = vst.msk [vmem:[%s154 + $0x48] sm:$0xff] %vm696, %v689
      %707 = vst.msk [vmem:[%s154 + $0x50] sm:$0xff] %vm696, %v690
      %708 = vst.msk [vmem:[%s154 + $0x58] sm:$0xff] %vm696, %v691
      %709 = vst.msk [vmem:[%s154 + $0x60] sm:$0xff] %vm696, %v692
      %710 = vst.msk [vmem:[%s154 + $0x68] sm:$0xff] %vm696, %v693
      %711 = vst.msk [vmem:[%s154 + $0x70] sm:$0xff] %vm696, %v694
      %712 = vst.msk [vmem:[%s154 + $0x78] sm:$0xff] %vm696, %v695
      %s713 = smul.u32 16, %s17
      %p714 = scmp.lt.s32.totalorder %s16, 1
      %s715 = scalar_select %p714, %s16, 1
      %p716 = scmp.lt.s32.totalorder %s713, 15
      %s717 = scalar_select %p716, %s713, 15
      %s718 = smul.addr %s715, 16
      %s719 = sadd.s32 %s717, %s718
      %s720 = smul.addr %s719, 8
      %s721 = scalar_lea.vmem %s1, %s720
      // Predicated region
      $region25: #{tpu_custom_call.1} parent=23 // pred_check
        %p722 = pneg %p72
      $region26: #{tpu_custom_call.1} parent=23 // pred_check_branch
        %724 = sbr.rel (%p722) target = $region28
      $region27: #{tpu_custom_call.1} parent=23 // pred_region
        %s725 = smul.u32 16, %s17
      $region28: #{tpu_custom_call.1} parent=23 // pred_fallthru
        _
    $region24: #{tpu_custom_call.1} parent=5 // pred_fallthru
      _
    %p726 = scmp.le.s32.totalorder 2, %s7
    // Predicated region
    $region29: #{tpu_custom_call.1} parent=5 // pred_check
      %p727 = pneg %p726
    $region30: #{tpu_custom_call.1} parent=5 // pred_check_branch
      %729 = sbr.rel (%p727) target = $region32
    $region31: #{tpu_custom_call.1} parent=5 // pred_region
      %s730 = ssub.s32 %s7, 2
      // Predicated region
      $region33: #{tpu_custom_call.1} parent=31 // pred_check
        %p731 = pneg %p78
      $region34: #{tpu_custom_call.1} parent=31 // pred_check_branch
        %733 = sbr.rel (%p731) target = $region36
      $region35: #{tpu_custom_call.1} parent=31 // pred_region
        %s734 = smul.u32 16, %s19
        %p735 = scmp.lt.s32.totalorder %s18, 1
        %s736 = scalar_select %p735, %s18, 1
        %p737 = scmp.lt.s32.totalorder %s734, 15
        %s738 = scalar_select %p737, %s734, 15
        %s739 = smul.addr %s736, 16
        %s740 = sadd.s32 %s738, %s739
        %s741 = smul.addr %s740, 8
        %s742 = scalar_lea.vmem %s1, %s741
      $region36: #{tpu_custom_call.1} parent=31 // pred_fallthru
        _
    $region32: #{tpu_custom_call.1} parent=5 // pred_fallthru
      _
  $region6: #{tpu_custom_call.1} parent=0 // loop_footer
    %s11 = sadd.s32 1, %s7
  $region7: #{tpu_custom_call.1} parent=0 // loop_footer_branch
    %6 = sbr.rel target = $region3
  $region8: #{tpu_custom_call.1} parent=0 // loop_exit
    _

</llo_original>
